<compile_context>
chip_gen: v5e
topology: v5e:2x2
jax: 0.10.0
libtpu: 0.0.40
codegen_flags: <defaults>
</compile_context>

<pallas_src>
import numpy as np
import jax
import jax.numpy as jnp
from jax.experimental import pallas as pl
from jax.experimental.pallas import tpu as pltpu

# ---------------- configuration (small, consistent with the module) ---------
NUM_CLASS = 4
NUM_HEADING_BIN = 4
NUM_SIZE_CLUSTER = 3
NUM_PROPOSAL = 64          # K
BATCH = 2                  # B
C_HID = 128                # conv1/conv2 channels (fixed by the module)
C_OUT = 2 + 3 + NUM_HEADING_BIN * 2 * 3 + NUM_SIZE_CLUSTER * 4 + NUM_CLASS  # 45
C_PAD = 128                # lane-dense padded conv3 output width
BN_EPS = 1e-5

NH, NS = NUM_HEADING_BIN, NUM_SIZE_CLUSTER

# -------- column map of the padded conv3 output (lanes of net) --------------
COL_XRES = 5 + NH                      # 9  : xheading_residuals_normalized
COL_YRES = 5 + 3 * NH                  # 17 : yheading_residuals_normalized
COL_ZRES = 5 + 5 * NH                  # 25 : zheading_residuals_normalized
COL_SIZE_SCORE = 5 + 6 * NH            # 29 : size_scores
COL_SIZE_RES = COL_SIZE_SCORE + NS     # 32 : size_residuals_normalized (9 cols)
COL_SEM = COL_SIZE_RES + 3 * NS        # 41 : sem_cls_scores
# spare lanes carrying the pre-scaled (decode-folded) copies:
COL_XRES_S = C_OUT                     # 45 : xheading_residuals (x pi/NH)
COL_YRES_S = C_OUT + NH                # 49
COL_ZRES_S = C_OUT + 2 * NH            # 53
COL_SIZE_RES_S = C_OUT + 3 * NH        # 57 : size_residuals (x mean_size_arr)
C_USED = COL_SIZE_RES_S + 3 * NS       # 66
assert COL_SEM + NUM_CLASS == C_OUT and C_USED <= C_PAD


# ---------------------------- Pallas kernel ---------------------------------
def proposal_mlp_kernel(x_ref, w1_ref, w2_ref, w3_ref, vec_ref, net_ref):
    """Fused relayout -> conv1+bn1+relu -> conv2+bn2+relu -> conv3 (padded).

    x_ref:   (C_HID, N) f32 channels-first activations, N = B*K
    w1/w2:   (C_HID, C_HID) bf16 matmul weights (stored C_in x C_out)
    w3_ref:  (C_HID, C_PAD) bf16 padded conv3 weights; lanes [45:66] hold
             pre-scaled residual columns (decode scalings folded in)
    vec_ref: (5, C_PAD) f32 packed vectors: g1, be1, g2, be2, b3
    net_ref: (N, C_PAD) f32 raw (+pre-scaled) proposal scores
    """
    vecs = vec_ref[...]                                  # (5, 128) f32
    g1, be1 = vecs[0:1, :], vecs[1:2, :]
    g2, be2 = vecs[2:3, :], vecs[3:4, :]
    b3 = vecs[4:5, :]

    def bn_relu(h, gamma, beta):
        # Training-mode BN (batch stats, biased variance), centered two-pass
        # variance for numerical safety; rsqrt goes to the EUP.
        mu = jnp.mean(h, axis=0, keepdims=True)
        xc = h - mu
        var = jnp.mean(xc * xc, axis=0, keepdims=True)
        scale = gamma * jax.lax.rsqrt(var + BN_EPS)
        return jnp.maximum(xc * scale + beta, 0.0)

    # In-VMEM NCK->NKC relayout (single 128-wide f32 XLU transpose) + bf16 cast
    # for the MXU; no HBM relayout in the surrounding XLA graph.
    x = jnp.transpose(x_ref[...]).astype(jnp.bfloat16)   # (N, C_HID) bf16

    # --- layer 1: conv1 (1x1 Conv1d == matmul; bias cancels under batch-stat BN)
    h = jnp.dot(x, w1_ref[...], preferred_element_type=jnp.float32)
    h = bn_relu(h, g1, be1)

    # --- layer 2: conv2 + BN + ReLU ------------------------------------------
    h = jnp.dot(h.astype(jnp.bfloat16), w2_ref[...],
                preferred_element_type=jnp.float32)
    h = bn_relu(h, g2, be2)

    # --- layer 3: conv3 (no BN / activation), lane-dense padded output -------
    net_ref[...] = (jnp.dot(h.astype(jnp.bfloat16), w3_ref[...],
                            preferred_element_type=jnp.float32) + b3)


def run_proposal_mlp(x_cf, w1, w2, w3, vecs):
    """x_cf: (C_HID, N) f32 channels-first -> (N, C_PAD) f32 scores."""
    c, n = x_cf.shape
    assert c == C_HID and n % 8 == 0
    args = (x_cf, w1, w2, w3, vecs)

    vmem_spec = pl.BlockSpec(memory_space=pltpu.MemorySpace.VMEM)

    flops = 2 * n * C_HID * (C_HID + C_HID + C_PAD)
    bytes_accessed = (sum(int(a.size) * a.dtype.itemsize for a in args)
                      + n * C_PAD * 4)

    return pl.pallas_call(
        proposal_mlp_kernel,
        out_shape=jax.ShapeDtypeStruct((n, C_PAD), jnp.float32),
        in_specs=[vmem_spec] * len(args),
        out_specs=vmem_spec,
        compiler_params=pltpu.CompilerParams(
            vmem_limit_bytes=32 * 1024 * 1024),
        cost_estimate=pl.CostEstimate(flops=flops,
                                      transcendentals=2 * C_HID,
                                      bytes_accessed=bytes_accessed),
    )(*args)


# ------------------------- wrapper (forward + decode) -----------------------
@jax.jit
def proposal_module_forward(aggregated_xyz, features, params):
    """
    aggregated_xyz: (B, K, 3)    -- end_points['aggregated_vote_xyz']
    features:       (B, 128, K)  -- PyTorch NCK layout (post vote_aggregation)
    Returns end_points dict mirroring decode_scores() (decode is pure slicing;
    all constant scalings were folded into the padded conv3 lanes).
    """
    b, c, k = features.shape
    # (B,C,K) -> (C,B,K) -> (C, B*K): major-dim shuffle only (K stays in lanes).
    # The lane<->sublane relayout + bf16 cast happen inside the kernel.
    x_cf = jnp.transpose(features, (1, 0, 2)).reshape(c, b * k)

    net_pad = run_proposal_mlp(x_cf, params["w1"], params["w2"],
                               params["w3"], params["vecs"])   # (N, 128) f32
    net = net_pad.reshape(b, k, C_PAD)                          # (B, K, 128)

    end_points = {}
    end_points["aggregated_vote_xyz"] = aggregated_xyz
    end_points["objectness_scores"] = net[:, :, 0:2]
    end_points["center"] = aggregated_xyz + net[:, :, 2:5]

    end_points["xheading_scores"] = net[:, :, 5:5 + NH]
    end_points["xheading_residuals_normalized"] = net[:, :, COL_XRES:COL_XRES + NH]
    end_points["xheading_residuals"] = net[:, :, COL_XRES_S:COL_XRES_S + NH]
    end_points["yheading_scores"] = net[:, :, 5 + 2 * NH:5 + 3 * NH]
    end_points["yheading_residuals_normalized"] = net[:, :, COL_YRES:COL_YRES + NH]
    end_points["yheading_residuals"] = net[:, :, COL_YRES_S:COL_YRES_S + NH]
    end_points["zheading_scores"] = net[:, :, 5 + 4 * NH:5 + 5 * NH]
    end_points["zheading_residuals_normalized"] = net[:, :, COL_ZRES:COL_ZRES + NH]
    end_points["zheading_residuals"] = net[:, :, COL_ZRES_S:COL_ZRES_S + NH]

    end_points["size_scores"] = net[:, :, COL_SIZE_SCORE:COL_SIZE_SCORE + NS]
    end_points["size_residuals_normalized"] = (
        net[:, :, COL_SIZE_RES:COL_SIZE_RES + 3 * NS].reshape(b, k, NS, 3))
    end_points["size_residuals"] = (
        net[:, :, COL_SIZE_RES_S:COL_SIZE_RES_S + 3 * NS].reshape(b, k, NS, 3))

    end_points["sem_cls_scores"] = net[:, :, COL_SEM:COL_SEM + NUM_CLASS]
    return end_points


# ---------------------------- parameter construction ------------------------
def _augment_conv3(w3_real, b3_real, mean_size_arr):
    """Pad conv3 to 128 lanes and write pre-scaled residual copies into the
    spare lanes (decode-time constant scalings folded into the weights)."""
    hs = np.pi / NUM_HEADING_BIN
    msa = jnp.asarray(mean_size_arr, jnp.float32).reshape(-1)      # (9,)
    w3 = jnp.zeros((C_HID, C_PAD), jnp.float32).at[:, :C_OUT].set(w3_real)
    b3 = jnp.zeros((C_PAD,), jnp.float32).at[:C_OUT].set(b3_real)
    for src, dst in ((COL_XRES, COL_XRES_S),
                     (COL_YRES, COL_YRES_S),
                     (COL_ZRES, COL_ZRES_S)):
        w3 = w3.at[:, dst:dst + NH].set(w3_real[:, src:src + NH] * hs)
        b3 = b3.at[dst:dst + NH].set(b3_real[src:src + NH] * hs)
    w3 = w3.at[:, COL_SIZE_RES_S:COL_SIZE_RES_S + 3 * NS].set(
        w3_real[:, COL_SIZE_RES:COL_SIZE_RES + 3 * NS] * msa[None, :])
    b3 = b3.at[COL_SIZE_RES_S:COL_SIZE_RES_S + 3 * NS].set(
        b3_real[COL_SIZE_RES:COL_SIZE_RES + 3 * NS] * msa)
    return w3.astype(jnp.bfloat16), b3


def init_params(key, mean_size_arr):
    ks = jax.random.split(key, 8)
    scale = 0.05
    # NOTE: conv1/conv2 biases are omitted on purpose -- they cancel exactly in
    # training-mode BatchNorm (h - mean(h)); eval-mode BN is not modeled here.
    w1 = (scale * jax.random.normal(ks[0], (C_HID, C_HID), jnp.float32)
          ).astype(jnp.bfloat16)
    w2 = (scale * jax.random.normal(ks[3], (C_HID, C_HID), jnp.float32)
          ).astype(jnp.bfloat16)
    g1 = 1.0 + 0.1 * jax.random.normal(ks[1], (C_HID,), jnp.float32)
    be1 = 0.1 * jax.random.normal(ks[2], (C_HID,), jnp.float32)
    g2 = 1.0 + 0.1 * jax.random.normal(ks[4], (C_HID,), jnp.float32)
    be2 = 0.1 * jax.random.normal(ks[5], (C_HID,), jnp.float32)
    w3_real = scale * jax.random.normal(ks[6], (C_HID, C_OUT), jnp.float32)
    b3_real = scale * jax.random.normal(ks[7], (C_OUT,), jnp.float32)
    w3, b3 = _augment_conv3(w3_real, b3_real, mean_size_arr)
    # Pack all five (128,)-vectors into ONE (5,128) f32 operand.
    vecs = jnp.stack([g1, be1, g2, be2, b3], axis=0)
    return {"w1": w1, "w2": w2, "w3": w3, "vecs": vecs}


# ----------------------- pure-JAX reference (correctness) -------------------
def reference_net(features, params):
    b, c, k = features.shape
    x = jnp.transpose(features, (0, 2, 1)).reshape(b * k, c).astype(jnp.bfloat16)
    vecs = params["vecs"]

    def bn_relu(h, gamma, beta):
        mu = jnp.mean(h, axis=0, keepdims=True)
        xc = h - mu
        var = jnp.mean(xc * xc, axis=0, keepdims=True)
        return jnp.maximum(xc * (gamma * jax.lax.rsqrt(var + BN_EPS)) + beta, 0.0)

    h = jnp.dot(x, params["w1"], preferred_element_type=jnp.float32)
    h = bn_relu(h, vecs[0:1], vecs[1:2])
    h = jnp.dot(h.astype(jnp.bfloat16), params["w2"],
                preferred_element_type=jnp.float32)
    h = bn_relu(h, vecs[2:3], vecs[3:4])
    net = jnp.dot(h.astype(jnp.bfloat16), params["w3"],
                  preferred_element_type=jnp.float32) + vecs[4:5]
    return net.reshape(b, k, C_PAD)


# --------------------------------- main --------------------------------------
if __name__ == "__main__":
    key = jax.random.PRNGKey(0)
    k_feat, k_xyz, k_par, k_msa = jax.random.split(key, 4)

    # post-vote-aggregation inputs (see TODO above)
    features = jax.random.normal(
        k_feat, (BATCH, C_HID, NUM_PROPOSAL), jnp.float32)     # (B, 128, K) NCK
    aggregated_xyz = jax.random.normal(
        k_xyz, (BATCH, NUM_PROPOSAL, 3), jnp.float32)          # (B, K, 3)
    mean_size_arr = jax.random.uniform(
        k_msa, (NUM_SIZE_CLUSTER, 3), jnp.float32, 0.5, 2.0)

    params = init_params(k_par, mean_size_arr)

    end_points = proposal_module_forward(aggregated_xyz, features, params)
    jax.block_until_ready(end_points)

    # shape checks
    assert end_points["objectness_scores"].shape == (BATCH, NUM_PROPOSAL, 2)
    assert end_points["center"].shape == (BATCH, NUM_PROPOSAL, 3)
    assert end_points["xheading_residuals"].shape == (BATCH, NUM_PROPOSAL, NH)
    assert end_points["size_residuals"].shape == (BATCH, NUM_PROPOSAL, NS, 3)
    assert end_points["sem_cls_scores"].shape == (BATCH, NUM_PROPOSAL, NUM_CLASS)
    assert bool(jnp.all(jnp.isfinite(end_points["center"])))

    # numerical check against a pure-JAX reference of the same MLP
    ref = jax.jit(reference_net)(features, params)
    assert bool(jnp.allclose(end_points["objectness_scores"], ref[:, :, 0:2],
                             atol=2e-2, rtol=2e-2))
    assert bool(jnp.allclose(end_points["sem_cls_scores"],
                             ref[:, :, COL_SEM:COL_SEM + NUM_CLASS],
                             atol=2e-2, rtol=2e-2))
    # spare-lane fold consistency: scaled residuals == normalized * constants
    assert bool(jnp.allclose(
        end_points["xheading_residuals"],
        end_points["xheading_residuals_normalized"] * (np.pi / NH),
        atol=5e-2, rtol=5e-2))
    assert bool(jnp.allclose(
        end_points["size_residuals"],
        end_points["size_residuals_normalized"] * mean_size_arr[None, None],
        atol=5e-2, rtol=5e-2))

    print("KERNEL_OK")
</pallas_src>

<mosaic_0001>
module attributes {stable_mosaic.version = 11 : i64} {
  func.func @proposal_mlp_kernel(%arg0: memref<128x128xf32, #tpu.memory_space<vmem>>, %arg1: memref<128x128xbf16, #tpu.memory_space<vmem>>, %arg2: memref<128x128xbf16, #tpu.memory_space<vmem>>, %arg3: memref<128x128xbf16, #tpu.memory_space<vmem>>, %arg4: memref<5x128xf32, #tpu.memory_space<vmem>>, %arg5: memref<128x128xf32, #tpu.memory_space<vmem>>) attributes {dimension_semantics = [], scalar_prefetch = 0 : i64, scratch_operands = 0 : i64, tpu.core_type = #tpu.core_type<tc>} {
    %c0 = arith.constant 0 : index
    %c0_0 = arith.constant 0 : index
    %0 = vector.load %arg4[%c0, %c0_0] : memref<5x128xf32, #tpu.memory_space<vmem>>, vector<5x128xf32>
    %1 = vector.extract_strided_slice %0 {offsets = [0, 0], sizes = [1, 128], strides = [1, 1]} : vector<5x128xf32> to vector<1x128xf32>
    %2 = vector.extract_strided_slice %0 {offsets = [1, 0], sizes = [1, 128], strides = [1, 1]} : vector<5x128xf32> to vector<1x128xf32>
    %3 = vector.extract_strided_slice %0 {offsets = [2, 0], sizes = [1, 128], strides = [1, 1]} : vector<5x128xf32> to vector<1x128xf32>
    %4 = vector.extract_strided_slice %0 {offsets = [3, 0], sizes = [1, 128], strides = [1, 1]} : vector<5x128xf32> to vector<1x128xf32>
    %5 = vector.extract_strided_slice %0 {offsets = [4, 0], sizes = [1, 128], strides = [1, 1]} : vector<5x128xf32> to vector<1x128xf32>
    %c0_1 = arith.constant 0 : index
    %c0_2 = arith.constant 0 : index
    %6 = vector.load %arg0[%c0_1, %c0_2] : memref<128x128xf32, #tpu.memory_space<vmem>>, vector<128x128xf32>
    %7 = tpu.transpose %6, [1, 0] : vector<128x128xf32> -> vector<128x128xf32>
    %8 = arith.truncf %7 : vector<128x128xf32> to vector<128x128xbf16>
    %c0_3 = arith.constant 0 : index
    %c0_4 = arith.constant 0 : index
    %9 = vector.load %arg1[%c0_3, %c0_4] : memref<128x128xbf16, #tpu.memory_space<vmem>>, vector<128x128xbf16>
    %cst = arith.constant dense<0.000000e+00> : vector<128x128xf32>
    %10 = tpu.matmul %8, %9, %cst {dimension_numbers = #tpu.dot_dimension_numbers<[1], [0], [0], [1], [0, 0, 1, 1], [], []>} : vector<128x128xbf16>, vector<128x128xbf16>, vector<128x128xf32> -> vector<128x128xf32>
    %cst_5 = arith.constant dense<0.000000e+00> : vector<128xf32>
    %11 = vector.multi_reduction <add>, %10, %cst_5 [0] : vector<128x128xf32> to vector<128xf32>
    %12 = vector.shape_cast %11 : vector<128xf32> to vector<1x128xf32>
    %cst_6 = arith.constant 1.280000e+02 : f32
    %13 = vector.broadcast %cst_6 : f32 to vector<1x128xf32>
    %14 = arith.divf %12, %13 : vector<1x128xf32>
    %15 = vector.broadcast %14 : vector<1x128xf32> to vector<128x128xf32>
    %16 = arith.subf %10, %15 : vector<128x128xf32>
    %17 = arith.mulf %16, %16 : vector<128x128xf32>
    %cst_7 = arith.constant dense<0.000000e+00> : vector<128xf32>
    %18 = vector.multi_reduction <add>, %17, %cst_7 [0] : vector<128x128xf32> to vector<128xf32>
    %19 = vector.shape_cast %18 : vector<128xf32> to vector<1x128xf32>
    %cst_8 = arith.constant 1.280000e+02 : f32
    %20 = vector.broadcast %cst_8 : f32 to vector<1x128xf32>
    %21 = arith.divf %19, %20 : vector<1x128xf32>
    %cst_9 = arith.constant 9.99999974E-6 : f32
    %22 = vector.broadcast %cst_9 : f32 to vector<1x128xf32>
    %23 = arith.addf %21, %22 : vector<1x128xf32>
    %24 = math.rsqrt %23 : vector<1x128xf32>
    %25 = arith.mulf %1, %24 : vector<1x128xf32>
    %26 = vector.broadcast %25 : vector<1x128xf32> to vector<128x128xf32>
    %27 = arith.mulf %16, %26 : vector<128x128xf32>
    %28 = vector.broadcast %2 : vector<1x128xf32> to vector<128x128xf32>
    %29 = arith.addf %27, %28 : vector<128x128xf32>
    %cst_10 = arith.constant 0.000000e+00 : f32
    %30 = vector.broadcast %cst_10 : f32 to vector<128x128xf32>
    %31 = arith.maximumf %29, %30 : vector<128x128xf32>
    %32 = arith.truncf %31 : vector<128x128xf32> to vector<128x128xbf16>
    %c0_11 = arith.constant 0 : index
    %c0_12 = arith.constant 0 : index
    %33 = vector.load %arg2[%c0_11, %c0_12] : memref<128x128xbf16, #tpu.memory_space<vmem>>, vector<128x128xbf16>
    %cst_13 = arith.constant dense<0.000000e+00> : vector<128x128xf32>
    %34 = tpu.matmul %32, %33, %cst_13 {dimension_numbers = #tpu.dot_dimension_numbers<[1], [0], [0], [1], [0, 0, 1, 1], [], []>} : vector<128x128xbf16>, vector<128x128xbf16>, vector<128x128xf32> -> vector<128x128xf32>
    %cst_14 = arith.constant dense<0.000000e+00> : vector<128xf32>
    %35 = vector.multi_reduction <add>, %34, %cst_14 [0] : vector<128x128xf32> to vector<128xf32>
    %36 = vector.shape_cast %35 : vector<128xf32> to vector<1x128xf32>
    %cst_15 = arith.constant 1.280000e+02 : f32
    %37 = vector.broadcast %cst_15 : f32 to vector<1x128xf32>
    %38 = arith.divf %36, %37 : vector<1x128xf32>
    %39 = vector.broadcast %38 : vector<1x128xf32> to vector<128x128xf32>
    %40 = arith.subf %34, %39 : vector<128x128xf32>
    %41 = arith.mulf %40, %40 : vector<128x128xf32>
    %cst_16 = arith.constant dense<0.000000e+00> : vector<128xf32>
    %42 = vector.multi_reduction <add>, %41, %cst_16 [0] : vector<128x128xf32> to vector<128xf32>
    %43 = vector.shape_cast %42 : vector<128xf32> to vector<1x128xf32>
    %cst_17 = arith.constant 1.280000e+02 : f32
    %44 = vector.broadcast %cst_17 : f32 to vector<1x128xf32>
    %45 = arith.divf %43, %44 : vector<1x128xf32>
    %cst_18 = arith.constant 9.99999974E-6 : f32
    %46 = vector.broadcast %cst_18 : f32 to vector<1x128xf32>
    %47 = arith.addf %45, %46 : vector<1x128xf32>
    %48 = math.rsqrt %47 : vector<1x128xf32>
    %49 = arith.mulf %3, %48 : vector<1x128xf32>
    %50 = vector.broadcast %49 : vector<1x128xf32> to vector<128x128xf32>
    %51 = arith.mulf %40, %50 : vector<128x128xf32>
    %52 = vector.broadcast %4 : vector<1x128xf32> to vector<128x128xf32>
    %53 = arith.addf %51, %52 : vector<128x128xf32>
    %cst_19 = arith.constant 0.000000e+00 : f32
    %54 = vector.broadcast %cst_19 : f32 to vector<128x128xf32>
    %55 = arith.maximumf %53, %54 : vector<128x128xf32>
    %56 = arith.truncf %55 : vector<128x128xf32> to vector<128x128xbf16>
    %c0_20 = arith.constant 0 : index
    %c0_21 = arith.constant 0 : index
    %57 = vector.load %arg3[%c0_20, %c0_21] : memref<128x128xbf16, #tpu.memory_space<vmem>>, vector<128x128xbf16>
    %cst_22 = arith.constant dense<0.000000e+00> : vector<128x128xf32>
    %58 = tpu.matmul %56, %57, %cst_22 {dimension_numbers = #tpu.dot_dimension_numbers<[1], [0], [0], [1], [0, 0, 1, 1], [], []>} : vector<128x128xbf16>, vector<128x128xbf16>, vector<128x128xf32> -> vector<128x128xf32>
    %59 = vector.broadcast %5 : vector<1x128xf32> to vector<128x128xf32>
    %60 = arith.addf %58, %59 : vector<128x128xf32>
    %c0_23 = arith.constant 0 : index
    %c0_24 = arith.constant 0 : index
    %61 = vector.load %arg5[%c0_23, %c0_24] : memref<128x128xf32, #tpu.memory_space<vmem>>, vector<128x128xf32>
    tpu.vector_store %arg5[%c0_23, %c0_24], %60 {strides = array<i32>} : memref<128x128xf32, #tpu.memory_space<vmem>>, vector<128x128xf32>,
    return
  }
}

</mosaic_0001>

<llo_original>
// kernel: proposal_module_forward.1
$region0: #{proposal_module_forward.1}
  #allocation0 [shape = 'u32[]', space=smem, size = 0x4, offset = 0x4, fixed_abs, tag = 'smem constant byte address 0x4 - core index']
  #allocation1 [shape = 'u32[72,128]{1,0:T(1,128)}', space=vmem, size = 0x9000, scoped, tag = 'internal scratch']
  %s0 = inlined_call_operand.vmem [shape: f32[128,128], index: 0, kind: input, shape index: {}]
  %s1 = inlined_call_operand.vmem [shape: bf16[128,128], index: 1, kind: input, shape index: {}]
  %s2 = inlined_call_operand.vmem [shape: bf16[128,128], index: 2, kind: input, shape index: {}]
  %s3 = inlined_call_operand.vmem [shape: bf16[128,128], index: 3, kind: input, shape index: {}]
  %s4 = inlined_call_operand.vmem [shape: f32[5,128], index: 4, kind: input, shape index: {}]
  %s5 = inlined_call_operand.vmem [shape: f32[128,128], index: 5, kind: output, shape index: {}]
  %s6 = sld [smem:[#allocation0]]
  $region30: #{proposal_module_forward.1} parent=0
    _
  %s8 = ssub.s32 1, %s6
  %s9 = scalar_select 0, %s8, %s6
  // Predicated region
  $region2: #{proposal_module_forward.1} parent=0 // pred_check
    _
  $region3: #{proposal_module_forward.1} parent=0 // pred_check_branch
    %11 = sbr.rel (0) target = $region5
  $region4: #{proposal_module_forward.1} parent=0 // pred_region
    _
  $region5: #{proposal_module_forward.1} parent=0 // pred_fallthru
    _
  // Predicated region
  $region6: #{proposal_module_forward.1} parent=0 // pred_check
    _
  $region7: #{proposal_module_forward.1} parent=0 // pred_check_branch
    %13 = sbr.rel (0) target = $region9
  $region8: #{proposal_module_forward.1} parent=0 // pred_region
    _
  $region9: #{proposal_module_forward.1} parent=0 // pred_fallthru
    _
  // Predicated region
  $region10: #{proposal_module_forward.1} parent=0 // pred_check
    _
  $region11: #{proposal_module_forward.1} parent=0 // pred_check_branch
    %15 = sbr.rel (0) target = $region13
  $region12: #{proposal_module_forward.1} parent=0 // pred_region
    _
  $region13: #{proposal_module_forward.1} parent=0 // pred_fallthru
    _
  // Predicated region
  $region14: #{proposal_module_forward.1} parent=0 // pred_check
    _
  $region15: #{proposal_module_forward.1} parent=0 // pred_check_branch
    %17 = sbr.rel (0) target = $region17
  $region16: #{proposal_module_forward.1} parent=0 // pred_region
    _
  $region17: #{proposal_module_forward.1} parent=0 // pred_fallthru
    _
  // Predicated region
  $region18: #{proposal_module_forward.1} parent=0 // pred_check
    _
  $region19: #{proposal_module_forward.1} parent=0 // pred_check_branch
    %19 = sbr.rel (0) target = $region21
  $region20: #{proposal_module_forward.1} parent=0 // pred_region
    _
  $region21: #{proposal_module_forward.1} parent=0 // pred_fallthru
    _
  %v20 = vld [vmem:[%s4] sm:$0x1f]
  %v21 = vld [vmem:[%s0] sm:$0xff]
  %v22 = vld [vmem:[%s0 + $0x8] sm:$0xff]
  %v23 = vld [vmem:[%s0 + $0x10] sm:$0xff]
  %v24 = vld [vmem:[%s0 + $0x18] sm:$0xff]
  %v25 = vld [vmem:[%s0 + $0x20] sm:$0xff]
  %v26 = vld [vmem:[%s0 + $0x28] sm:$0xff]
  %v27 = vld [vmem:[%s0 + $0x30] sm:$0xff]
  %v28 = vld [vmem:[%s0 + $0x38] sm:$0xff]
  %v29 = vld [vmem:[%s0 + $0x40] sm:$0xff]
  %v30 = vld [vmem:[%s0 + $0x48] sm:$0xff]
  %v31 = vld [vmem:[%s0 + $0x50] sm:$0xff]
  %v32 = vld [vmem:[%s0 + $0x58] sm:$0xff]
  %v33 = vld [vmem:[%s0 + $0x60] sm:$0xff]
  %v34 = vld [vmem:[%s0 + $0x68] sm:$0xff]
  %v35 = vld [vmem:[%s0 + $0x70] sm:$0xff]
  %v36 = vld [vmem:[%s0 + $0x78] sm:$0xff]
  %37 = vxpose.xlu0.b32.start [1/16] %v21, 128
  %38 = vxpose.xlu0.b32.cont [2/16] %v22, 128
  %39 = vxpose.xlu0.b32.cont [3/16] %v23, 128
  %40 = vxpose.xlu0.b32.cont [4/16] %v24, 128
  %41 = vxpose.xlu0.b32.cont [5/16] %v25, 128
  %42 = vxpose.xlu0.b32.cont [6/16] %v26, 128
  %43 = vxpose.xlu0.b32.cont [7/16] %v27, 128
  %44 = vxpose.xlu0.b32.cont [8/16] %v28, 128
  %45 = vxpose.xlu0.b32.cont [9/16] %v29, 128
  %46 = vxpose.xlu0.b32.cont [10/16] %v30, 128
  %47 = vxpose.xlu0.b32.cont [11/16] %v31, 128
  %48 = vxpose.xlu0.b32.cont [12/16] %v32, 128
  %49 = vxpose.xlu0.b32.cont [13/16] %v33, 128
  %50 = vxpose.xlu0.b32.cont [14/16] %v34, 128
  %51 = vxpose.xlu0.b32.cont [15/16] %v35, 128
  %52 = vxpose.xlu0.b32.end [16/16] %v36, 128
  %v53 = vpop.trf.xlu0
  %v54 = vpop.trf.xlu0
  %v55 = vpop.trf.xlu0
  %v56 = vpop.trf.xlu0
  %v57 = vpop.trf.xlu0
  %v58 = vpop.trf.xlu0
  %v59 = vpop.trf.xlu0
  %v60 = vpop.trf.xlu0
  %v61 = vpop.trf.xlu0
  %v62 = vpop.trf.xlu0
  %v63 = vpop.trf.xlu0
  %v64 = vpop.trf.xlu0
  %v65 = vpop.trf.xlu0
  %v66 = vpop.trf.xlu0
  %v67 = vpop.trf.xlu0
  %v68 = vpop.trf.xlu0
  %v69 = vpack.c.bf16 %v54, %v53
  %v70 = vpack.c.bf16 %v56, %v55
  %v71 = vpack.c.bf16 %v58, %v57
  %v72 = vpack.c.bf16 %v60, %v59
  %v73 = vpack.c.bf16 %v62, %v61
  %v74 = vpack.c.bf16 %v64, %v63
  %v75 = vpack.c.bf16 %v66, %v65
  %v76 = vpack.c.bf16 %v68, %v67
  %v77 = vld [vmem:[%s1] sm:$0xf]
  %v78 = vld [vmem:[%s1 + $0x4] sm:$0xf]
  %v79 = vld [vmem:[%s1 + $0x8] sm:$0xf]
  %v80 = vld [vmem:[%s1 + $0xc] sm:$0xf]
  %v81 = vld [vmem:[%s1 + $0x10] sm:$0xf]
  %v82 = vld [vmem:[%s1 + $0x14] sm:$0xf]
  %v83 = vld [vmem:[%s1 + $0x18] sm:$0xf]
  %v84 = vld [vmem:[%s1 + $0x1c] sm:$0xf]
  %v85 = vld [vmem:[%s1 + $0x20] sm:$0xf]
  %v86 = vld [vmem:[%s1 + $0x24] sm:$0xf]
  %v87 = vld [vmem:[%s1 + $0x28] sm:$0xf]
  %v88 = vld [vmem:[%s1 + $0x2c] sm:$0xf]
  %v89 = vld [vmem:[%s1 + $0x30] sm:$0xf]
  %v90 = vld [vmem:[%s1 + $0x34] sm:$0xf]
  %v91 = vld [vmem:[%s1 + $0x38] sm:$0xf]
  %v92 = vld [vmem:[%s1 + $0x3c] sm:$0xf]
  %v109 = vunpack.c.l.b16 %v77
  %v110 = vunpack.c.l.b16 %v78
  %v111 = vunpack.c.l.b16 %v79
  %v112 = vunpack.c.l.b16 %v80
  %v113 = vunpack.c.l.b16 %v81
  %v114 = vunpack.c.l.b16 %v82
  %v115 = vunpack.c.l.b16 %v83
  %v116 = vunpack.c.l.b16 %v84
  %v117 = vunpack.c.l.b16 %v85
  %v118 = vunpack.c.l.b16 %v86
  %v119 = vunpack.c.l.b16 %v87
  %v120 = vunpack.c.l.b16 %v88
  %v121 = vunpack.c.l.b16 %v89
  %v122 = vunpack.c.l.b16 %v90
  %v123 = vunpack.c.l.b16 %v91
  %v124 = vunpack.c.l.b16 %v92
  %v125 = vpack.c.b16 %v110, %v109
  %v126 = vpack.c.b16 %v112, %v111
  %v127 = vpack.c.b16 %v114, %v113
  %v128 = vpack.c.b16 %v116, %v115
  %v129 = vpack.c.b16 %v118, %v117
  %v130 = vpack.c.b16 %v120, %v119
  %v131 = vpack.c.b16 %v122, %v121
  %v132 = vpack.c.b16 %v124, %v123
  %141 = vmatpush.bf16.msra.mxu0 %v132
  %142 = vmatpush.bf16.msra.mxu0 %v131
  %143 = vmatpush.bf16.msra.mxu0 %v130
  %144 = vmatpush.bf16.msra.mxu0 %v129
  %145 = vmatpush.bf16.msra.mxu0 %v128
  %146 = vmatpush.bf16.msra.mxu0 %v127
  %147 = vmatpush.bf16.msra.mxu0 %v126
  %148 = vmatpush.bf16.msra.mxu0 %v125
  %149 = vmatmul.bf16.gmra.mxu0 %v69
  %v150 = vpop.f32.mrf.mxu0
  %v151 = vadd.f32 0.0, %v150
  %v152 = vpop.f32.mrf.mxu0
  %v153 = vadd.f32 0.0, %v152
  %154 = vmatmul.bf16.gmra.mxu0 %v70
  %v155 = vpop.f32.mrf.mxu0
  %v156 = vadd.f32 0.0, %v155
  %v157 = vpop.f32.mrf.mxu0
  %v158 = vadd.f32 0.0, %v157
  %159 = vmatmul.bf16.gmra.mxu0 %v71
  %v160 = vpop.f32.mrf.mxu0
  %v161 = vadd.f32 0.0, %v160
  %v162 = vpop.f32.mrf.mxu0
  %v163 = vadd.f32 0.0, %v162
  %164 = vmatmul.bf16.gmra.mxu0 %v72
  %v165 = vpop.f32.mrf.mxu0
  %v166 = vadd.f32 0.0, %v165
  %v167 = vpop.f32.mrf.mxu0
  %v168 = vadd.f32 0.0, %v167
  %169 = vmatmul.bf16.gmra.mxu0 %v73
  %v170 = vpop.f32.mrf.mxu0
  %v171 = vadd.f32 0.0, %v170
  %v172 = vpop.f32.mrf.mxu0
  %v173 = vadd.f32 0.0, %v172
  %174 = vmatmul.bf16.gmra.mxu0 %v74
  %v175 = vpop.f32.mrf.mxu0
  %v176 = vadd.f32 0.0, %v175
  %v177 = vpop.f32.mrf.mxu0
  %v178 = vadd.f32 0.0, %v177
  %179 = vmatmul.bf16.gmra.mxu0 %v75
  %v180 = vpop.f32.mrf.mxu0
  %v181 = vadd.f32 0.0, %v180
  %v182 = vpop.f32.mrf.mxu0
  %v183 = vadd.f32 0.0, %v182
  %184 = vmatmul.bf16.gmra.mxu0 %v76
  %v185 = vpop.f32.mrf.mxu0
  %v186 = vadd.f32 0.0, %v185
  %v187 = vpop.f32.mrf.mxu0
  %v188 = vadd.f32 0.0, %v187
  %189 = vdwg.mxu0
  %v190 = vadd.f32 %v151, %v153
  %v191 = vadd.f32 %v190, %v156
  %v192 = vadd.f32 %v191, %v158
  %v193 = vadd.f32 %v192, %v161
  %v194 = vadd.f32 %v193, %v163
  %v195 = vadd.f32 %v194, %v166
  %v196 = vadd.f32 %v195, %v168
  %v197 = vadd.f32 %v196, %v171
  %v198 = vadd.f32 %v197, %v173
  %v199 = vadd.f32 %v198, %v176
  %v200 = vadd.f32 %v199, %v178
  %v201 = vadd.f32 %v200, %v181
  %v202 = vadd.f32 %v201, %v183
  %v203 = vadd.f32 %v202, %v186
  %v204 = vadd.f32 %v203, %v188
  %v205 = vrot.slane %v204, 4
  %v206 = vadd.f32 %v204, %v205
  %v207 = vrot.slane %v206, 2
  %v208 = vadd.f32 %v206, %v207
  %v209 = vrot.slane %v208, 1
  %v210 = vadd.f32 %v208, %v209
  %v211 = vrcp.pop 128.0
  %v212 = vmul.f32 128.0, %v211
  %v213 = vsub.f32 1.0, %v212
  %v214 = vmul.f32 %v211, %v213
  %v215 = vadd.f32 %v211, %v214
  %vm216 = vweird.f32 %v211
  %v217 = vsel %vm216, %v211, %v215
  %v218 = vmul.f32 %v210, %v217
  %v219 = vsub.f32 %v151, %v218
  %v220 = vsub.f32 %v153, %v218
  %v221 = vsub.f32 %v156, %v218
  %v222 = vsub.f32 %v158, %v218
  %v223 = vsub.f32 %v161, %v218
  %v224 = vsub.f32 %v163, %v218
  %v225 = vsub.f32 %v166, %v218
  %v226 = vsub.f32 %v168, %v218
  %v227 = vsub.f32 %v171, %v218
  %v228 = vsub.f32 %v173, %v218
  %v229 = vsub.f32 %v176, %v218
  %v230 = vsub.f32 %v178, %v218
  %v231 = vsub.f32 %v181, %v218
  %v232 = vsub.f32 %v183, %v218
  %v233 = vsub.f32 %v186, %v218
  %v234 = vsub.f32 %v188, %v218
  %v235 = vmul.f32 %v219, %v219
  %v236 = vmul.f32 %v220, %v220
  %v237 = vmul.f32 %v221, %v221
  %v238 = vmul.f32 %v222, %v222
  %v239 = vmul.f32 %v223, %v223
  %v240 = vmul.f32 %v224, %v224
  %v241 = vmul.f32 %v225, %v225
  %v242 = vmul.f32 %v226, %v226
  %v243 = vmul.f32 %v227, %v227
  %v244 = vmul.f32 %v228, %v228
  %v245 = vmul.f32 %v229, %v229
  %v246 = vmul.f32 %v230, %v230
  %v247 = vmul.f32 %v231, %v231
  %v248 = vmul.f32 %v232, %v232
  %v249 = vmul.f32 %v233, %v233
  %v250 = vmul.f32 %v234, %v234
  %v251 = vadd.f32 %v235, %v236
  %v252 = vadd.f32 %v251, %v237
  %v253 = vadd.f32 %v252, %v238
  %v254 = vadd.f32 %v253, %v239
  %v255 = vadd.f32 %v254, %v240
  %v256 = vadd.f32 %v255, %v241
  %v257 = vadd.f32 %v256, %v242
  %v258 = vadd.f32 %v257, %v243
  %v259 = vadd.f32 %v258, %v244
  %v260 = vadd.f32 %v259, %v245
  %v261 = vadd.f32 %v260, %v246
  %v262 = vadd.f32 %v261, %v247
  %v263 = vadd.f32 %v262, %v248
  %v264 = vadd.f32 %v263, %v249
  %v265 = vadd.f32 %v264, %v250
  %v266 = vrot.slane %v265, 4
  %v267 = vadd.f32 %v265, %v266
  %v268 = vrot.slane %v267, 2
  %v269 = vadd.f32 %v267, %v268
  %v270 = vrot.slane %v269, 1
  %v271 = vadd.f32 %v269, %v270
  %v272 = vmul.f32 %v271, %v217
  %v273 = vadd.f32 %v272, 1e-05
  %v274 = vrsqrt.pop %v273
  %v275 = vmul.f32 %v274, %v273
  %v276 = vmul.f32 %v275, %v274
  %v277 = vmul.f32 0.5, %v276
  %v278 = vsub.f32 1.5, %v277
  %v279 = vmul.f32 %v274, %v278
  %vm280 = vweird.f32 %v273
  %vm281 = vweird.f32 %v274
  %vm282 = vmor %vm280, %vm281
  %v283 = vsel %vm282, %v274, %v279
  %v284 = vmul.f32 %v20, %v283
  %v285 = vperm.slane %v284, 0
  %v286 = vmul.f32 %v219, %v285
  %v287 = vmul.f32 %v220, %v285
  %v288 = vmul.f32 %v221, %v285
  %v289 = vmul.f32 %v222, %v285
  %v290 = vmul.f32 %v223, %v285
  %v291 = vmul.f32 %v224, %v285
  %v292 = vmul.f32 %v225, %v285
  %v293 = vmul.f32 %v226, %v285
  %v294 = vmul.f32 %v227, %v285
  %v295 = vmul.f32 %v228, %v285
  %v296 = vmul.f32 %v229, %v285
  %v297 = vmul.f32 %v230, %v285
  %v298 = vmul.f32 %v231, %v285
  %v299 = vmul.f32 %v232, %v285
  %v300 = vmul.f32 %v233, %v285
  %v301 = vmul.f32 %v234, %v285
  %v302 = vperm.slane %v20, 1
  %v303 = vadd.f32 %v286, %v302
  %v304 = vadd.f32 %v287, %v302
  %v305 = vadd.f32 %v288, %v302
  %v306 = vadd.f32 %v289, %v302
  %v307 = vadd.f32 %v290, %v302
  %v308 = vadd.f32 %v291, %v302
  %v309 = vadd.f32 %v292, %v302
  %v310 = vadd.f32 %v293, %v302
  %v311 = vadd.f32 %v294, %v302
  %v312 = vadd.f32 %v295, %v302
  %v313 = vadd.f32 %v296, %v302
  %v314 = vadd.f32 %v297, %v302
  %v315 = vadd.f32 %v298, %v302
  %v316 = vadd.f32 %v299, %v302
  %v317 = vadd.f32 %v300, %v302
  %v318 = vadd.f32 %v301, %v302
  %v319 = vmax.f32 %v303, 0.0
  %v320 = vmax.f32 %v304, 0.0
  %v321 = vmax.f32 %v305, 0.0
  %v322 = vmax.f32 %v306, 0.0
  %v323 = vmax.f32 %v307, 0.0
  %v324 = vmax.f32 %v308, 0.0
  %v325 = vmax.f32 %v309, 0.0
  %v326 = vmax.f32 %v310, 0.0
  %v327 = vmax.f32 %v311, 0.0
  %v328 = vmax.f32 %v312, 0.0
  %v329 = vmax.f32 %v313, 0.0
  %v330 = vmax.f32 %v314, 0.0
  %v331 = vmax.f32 %v315, 0.0
  %v332 = vmax.f32 %v316, 0.0
  %v333 = vmax.f32 %v317, 0.0
  %v334 = vmax.f32 %v318, 0.0
  %v335 = vpack.c.bf16 %v320, %v319
  %v336 = vpack.c.bf16 %v322, %v321
  %v337 = vpack.c.bf16 %v324, %v323
  %v338 = vpack.c.bf16 %v326, %v325
  %v339 = vpack.c.bf16 %v328, %v327
  %v340 = vpack.c.bf16 %v330, %v329
  %v341 = vpack.c.bf16 %v332, %v331
  %v342 = vpack.c.bf16 %v334, %v333
  %v343 = vld [vmem:[%s2] sm:$0xf]
  %v344 = vld [vmem:[%s2 + $0x4] sm:$0xf]
  %v345 = vld [vmem:[%s2 + $0x8] sm:$0xf]
  %v346 = vld [vmem:[%s2 + $0xc] sm:$0xf]
  %v347 = vld [vmem:[%s2 + $0x10] sm:$0xf]
  %v348 = vld [vmem:[%s2 + $0x14] sm:$0xf]
  %v349 = vld [vmem:[%s2 + $0x18] sm:$0xf]
  %v350 = vld [vmem:[%s2 + $0x1c] sm:$0xf]
  %v351 = vld [vmem:[%s2 + $0x20] sm:$0xf]
  %v352 = vld [vmem:[%s2 + $0x24] sm:$0xf]
  %v353 = vld [vmem:[%s2 + $0x28] sm:$0xf]
  %v354 = vld [vmem:[%s2 + $0x2c] sm:$0xf]
  %v355 = vld [vmem:[%s2 + $0x30] sm:$0xf]
  %v356 = vld [vmem:[%s2 + $0x34] sm:$0xf]
  %v357 = vld [vmem:[%s2 + $0x38] sm:$0xf]
  %v358 = vld [vmem:[%s2 + $0x3c] sm:$0xf]
  %v375 = vunpack.c.l.b16 %v343
  %v376 = vunpack.c.l.b16 %v344
  %v377 = vunpack.c.l.b16 %v345
  %v378 = vunpack.c.l.b16 %v346
  %v379 = vunpack.c.l.b16 %v347
  %v380 = vunpack.c.l.b16 %v348
  %v381 = vunpack.c.l.b16 %v349
  %v382 = vunpack.c.l.b16 %v350
  %v383 = vunpack.c.l.b16 %v351
  %v384 = vunpack.c.l.b16 %v352
  %v385 = vunpack.c.l.b16 %v353
  %v386 = vunpack.c.l.b16 %v354
  %v387 = vunpack.c.l.b16 %v355
  %v388 = vunpack.c.l.b16 %v356
  %v389 = vunpack.c.l.b16 %v357
  %v390 = vunpack.c.l.b16 %v358
  %v391 = vpack.c.b16 %v376, %v375
  %v392 = vpack.c.b16 %v378, %v377
  %v393 = vpack.c.b16 %v380, %v379
  %v394 = vpack.c.b16 %v382, %v381
  %v395 = vpack.c.b16 %v384, %v383
  %v396 = vpack.c.b16 %v386, %v385
  %v397 = vpack.c.b16 %v388, %v387
  %v398 = vpack.c.b16 %v390, %v389
  %407 = vmatpush.bf16.msra.mxu0 %v398
  %408 = vmatpush.bf16.msra.mxu0 %v397
  %409 = vmatpush.bf16.msra.mxu0 %v396
  %410 = vmatpush.bf16.msra.mxu0 %v395
  %411 = vmatpush.bf16.msra.mxu0 %v394
  %412 = vmatpush.bf16.msra.mxu0 %v393
  %413 = vmatpush.bf16.msra.mxu0 %v392
  %414 = vmatpush.bf16.msra.mxu0 %v391
  %415 = vmatmul.bf16.gmra.mxu0 %v335
  %v416 = vpop.f32.mrf.mxu0
  %v417 = vadd.f32 0.0, %v416
  %v418 = vpop.f32.mrf.mxu0
  %v419 = vadd.f32 0.0, %v418
  %420 = vmatmul.bf16.gmra.mxu0 %v336
  %v421 = vpop.f32.mrf.mxu0
  %v422 = vadd.f32 0.0, %v421
  %v423 = vpop.f32.mrf.mxu0
  %v424 = vadd.f32 0.0, %v423
  %425 = vmatmul.bf16.gmra.mxu0 %v337
  %v426 = vpop.f32.mrf.mxu0
  %v427 = vadd.f32 0.0, %v426
  %v428 = vpop.f32.mrf.mxu0
  %v429 = vadd.f32 0.0, %v428
  %430 = vmatmul.bf16.gmra.mxu0 %v338
  %v431 = vpop.f32.mrf.mxu0
  %v432 = vadd.f32 0.0, %v431
  %v433 = vpop.f32.mrf.mxu0
  %v434 = vadd.f32 0.0, %v433
  %435 = vmatmul.bf16.gmra.mxu0 %v339
  %v436 = vpop.f32.mrf.mxu0
  %v437 = vadd.f32 0.0, %v436
  %v438 = vpop.f32.mrf.mxu0
  %v439 = vadd.f32 0.0, %v438
  %440 = vmatmul.bf16.gmra.mxu0 %v340
  %v441 = vpop.f32.mrf.mxu0
  %v442 = vadd.f32 0.0, %v441
  %v443 = vpop.f32.mrf.mxu0
  %v444 = vadd.f32 0.0, %v443
  %445 = vmatmul.bf16.gmra.mxu0 %v341
  %v446 = vpop.f32.mrf.mxu0
  %v447 = vadd.f32 0.0, %v446
  %v448 = vpop.f32.mrf.mxu0
  %v449 = vadd.f32 0.0, %v448
  %450 = vmatmul.bf16.gmra.mxu0 %v342
  %v451 = vpop.f32.mrf.mxu0
  %v452 = vadd.f32 0.0, %v451
  %v453 = vpop.f32.mrf.mxu0
  %v454 = vadd.f32 0.0, %v453
  %455 = vdwg.mxu0
  %v456 = vadd.f32 %v417, %v419
  %v457 = vadd.f32 %v456, %v422
  %v458 = vadd.f32 %v457, %v424
  %v459 = vadd.f32 %v458, %v427
  %v460 = vadd.f32 %v459, %v429
  %v461 = vadd.f32 %v460, %v432
  %v462 = vadd.f32 %v461, %v434
  %v463 = vadd.f32 %v462, %v437
  %v464 = vadd.f32 %v463, %v439
  %v465 = vadd.f32 %v464, %v442
  %v466 = vadd.f32 %v465, %v444
  %v467 = vadd.f32 %v466, %v447
  %v468 = vadd.f32 %v467, %v449
  %v469 = vadd.f32 %v468, %v452
  %v470 = vadd.f32 %v469, %v454
  %v471 = vrot.slane %v470, 4
  %v472 = vadd.f32 %v470, %v471
  %v473 = vrot.slane %v472, 2
  %v474 = vadd.f32 %v472, %v473
  %v475 = vrot.slane %v474, 1
  %v476 = vadd.f32 %v474, %v475
  %v477 = vmul.f32 %v476, %v217
  %v478 = vsub.f32 %v417, %v477
  %v479 = vsub.f32 %v419, %v477
  %v480 = vsub.f32 %v422, %v477
  %v481 = vsub.f32 %v424, %v477
  %v482 = vsub.f32 %v427, %v477
  %v483 = vsub.f32 %v429, %v477
  %v484 = vsub.f32 %v432, %v477
  %v485 = vsub.f32 %v434, %v477
  %v486 = vsub.f32 %v437, %v477
  %v487 = vsub.f32 %v439, %v477
  %v488 = vsub.f32 %v442, %v477
  %v489 = vsub.f32 %v444, %v477
  %v490 = vsub.f32 %v447, %v477
  %v491 = vsub.f32 %v449, %v477
  %v492 = vsub.f32 %v452, %v477
  %v493 = vsub.f32 %v454, %v477
  %v494 = vmul.f32 %v478, %v478
  %v495 = vmul.f32 %v479, %v479
  %v496 = vmul.f32 %v480, %v480
  %v497 = vmul.f32 %v481, %v481
  %v498 = vmul.f32 %v482, %v482
  %v499 = vmul.f32 %v483, %v483
  %v500 = vmul.f32 %v484, %v484
  %v501 = vmul.f32 %v485, %v485
  %v502 = vmul.f32 %v486, %v486
  %v503 = vmul.f32 %v487, %v487
  %v504 = vmul.f32 %v488, %v488
  %v505 = vmul.f32 %v489, %v489
  %v506 = vmul.f32 %v490, %v490
  %v507 = vmul.f32 %v491, %v491
  %v508 = vmul.f32 %v492, %v492
  %v509 = vmul.f32 %v493, %v493
  %v510 = vadd.f32 %v494, %v495
  %v511 = vadd.f32 %v510, %v496
  %v512 = vadd.f32 %v511, %v497
  %v513 = vadd.f32 %v512, %v498
  %v514 = vadd.f32 %v513, %v499
  %v515 = vadd.f32 %v514, %v500
  %v516 = vadd.f32 %v515, %v501
  %v517 = vadd.f32 %v516, %v502
  %v518 = vadd.f32 %v517, %v503
  %v519 = vadd.f32 %v518, %v504
  %v520 = vadd.f32 %v519, %v505
  %v521 = vadd.f32 %v520, %v506
  %v522 = vadd.f32 %v521, %v507
  %v523 = vadd.f32 %v522, %v508
  %v524 = vadd.f32 %v523, %v509
  %v525 = vrot.slane %v524, 4
  %v526 = vadd.f32 %v524, %v525
  %v527 = vrot.slane %v526, 2
  %v528 = vadd.f32 %v526, %v527
  %v529 = vrot.slane %v528, 1
  %v530 = vadd.f32 %v528, %v529
  %v531 = vmul.f32 %v530, %v217
  %v532 = vadd.f32 %v531, 1e-05
  %v533 = vrsqrt.pop %v532
  %v534 = vmul.f32 %v533, %v532
  %v535 = vmul.f32 %v534, %v533
  %v536 = vmul.f32 0.5, %v535
  %v537 = vsub.f32 1.5, %v536
  %v538 = vmul.f32 %v533, %v537
  %vm539 = vweird.f32 %v532
  %vm540 = vweird.f32 %v533
  %vm541 = vmor %vm539, %vm540
  %v542 = vsel %vm541, %v533, %v538
  %v543 = vmul.f32 %v20, %v542
  %v544 = vperm.slane %v543, 2
  %v545 = vmul.f32 %v478, %v544
  %v546 = vmul.f32 %v479, %v544
  %v547 = vmul.f32 %v480, %v544
  %v548 = vmul.f32 %v481, %v544
  %v549 = vmul.f32 %v482, %v544
  %v550 = vmul.f32 %v483, %v544
  %v551 = vmul.f32 %v484, %v544
  %v552 = vmul.f32 %v485, %v544
  %v553 = vmul.f32 %v486, %v544
  %v554 = vmul.f32 %v487, %v544
  %v555 = vmul.f32 %v488, %v544
  %v556 = vmul.f32 %v489, %v544
  %v557 = vmul.f32 %v490, %v544
  %v558 = vmul.f32 %v491, %v544
  %v559 = vmul.f32 %v492, %v544
  %v560 = vmul.f32 %v493, %v544
  %v561 = vperm.slane %v20, 3
  %v562 = vadd.f32 %v545, %v561
  %v563 = vadd.f32 %v546, %v561
  %v564 = vadd.f32 %v547, %v561
  %v565 = vadd.f32 %v548, %v561
  %v566 = vadd.f32 %v549, %v561
  %v567 = vadd.f32 %v550, %v561
  %v568 = vadd.f32 %v551, %v561
  %v569 = vadd.f32 %v552, %v561
  %v570 = vadd.f32 %v553, %v561
  %v571 = vadd.f32 %v554, %v561
  %v572 = vadd.f32 %v555, %v561
  %v573 = vadd.f32 %v556, %v561
  %v574 = vadd.f32 %v557, %v561
  %v575 = vadd.f32 %v558, %v561
  %v576 = vadd.f32 %v559, %v561
  %v577 = vadd.f32 %v560, %v561
  %v578 = vmax.f32 %v562, 0.0
  %v579 = vmax.f32 %v563, 0.0
  %v580 = vmax.f32 %v564, 0.0
  %v581 = vmax.f32 %v565, 0.0
  %v582 = vmax.f32 %v566, 0.0
  %v583 = vmax.f32 %v567, 0.0
  %v584 = vmax.f32 %v568, 0.0
  %v585 = vmax.f32 %v569, 0.0
  %v586 = vmax.f32 %v570, 0.0
  %v587 = vmax.f32 %v571, 0.0
  %v588 = vmax.f32 %v572, 0.0
  %v589 = vmax.f32 %v573, 0.0
  %v590 = vmax.f32 %v574, 0.0
  %v591 = vmax.f32 %v575, 0.0
  %v592 = vmax.f32 %v576, 0.0
  %v593 = vmax.f32 %v577, 0.0
  %v594 = vpack.c.bf16 %v579, %v578
  %v595 = vpack.c.bf16 %v581, %v580
  %v596 = vpack.c.bf16 %v583, %v582
  %v597 = vpack.c.bf16 %v585, %v584
  %v598 = vpack.c.bf16 %v587, %v586
  %v599 = vpack.c.bf16 %v589, %v588
  %v600 = vpack.c.bf16 %v591, %v590
  %v601 = vpack.c.bf16 %v593, %v592
  %v602 = vld [vmem:[%s3] sm:$0xf]
  %v603 = vld [vmem:[%s3 + $0x4] sm:$0xf]
  %v604 = vld [vmem:[%s3 + $0x8] sm:$0xf]
  %v605 = vld [vmem:[%s3 + $0xc] sm:$0xf]
  %v606 = vld [vmem:[%s3 + $0x10] sm:$0xf]
  %v607 = vld [vmem:[%s3 + $0x14] sm:$0xf]
  %v608 = vld [vmem:[%s3 + $0x18] sm:$0xf]
  %v609 = vld [vmem:[%s3 + $0x1c] sm:$0xf]
  %v610 = vld [vmem:[%s3 + $0x20] sm:$0xf]
  %v611 = vld [vmem:[%s3 + $0x24] sm:$0xf]
  %v612 = vld [vmem:[%s3 + $0x28] sm:$0xf]
  %v613 = vld [vmem:[%s3 + $0x2c] sm:$0xf]
  %v614 = vld [vmem:[%s3 + $0x30] sm:$0xf]
  %v615 = vld [vmem:[%s3 + $0x34] sm:$0xf]
  %v616 = vld [vmem:[%s3 + $0x38] sm:$0xf]
  %v617 = vld [vmem:[%s3 + $0x3c] sm:$0xf]
  %v618 = vperm.slane %v20, 4
  %v635 = vunpack.c.l.b16 %v602
  %v636 = vunpack.c.l.b16 %v603
  %v637 = vunpack.c.l.b16 %v604
  %v638 = vunpack.c.l.b16 %v605
  %v639 = vunpack.c.l.b16 %v606
  %v640 = vunpack.c.l.b16 %v607
  %v641 = vunpack.c.l.b16 %v608
  %v642 = vunpack.c.l.b16 %v609
  %v643 = vunpack.c.l.b16 %v610
  %v644 = vunpack.c.l.b16 %v611
  %v645 = vunpack.c.l.b16 %v612
  %v646 = vunpack.c.l.b16 %v613
  %v647 = vunpack.c.l.b16 %v614
  %v648 = vunpack.c.l.b16 %v615
  %v649 = vunpack.c.l.b16 %v616
  %v650 = vunpack.c.l.b16 %v617
  %v651 = vpack.c.b16 %v636, %v635
  %v652 = vpack.c.b16 %v638, %v637
  %v653 = vpack.c.b16 %v640, %v639
  %v654 = vpack.c.b16 %v642, %v641
  %v655 = vpack.c.b16 %v644, %v643
  %v656 = vpack.c.b16 %v646, %v645
  %v657 = vpack.c.b16 %v648, %v647
  %v658 = vpack.c.b16 %v650, %v649
  %667 = vmatpush.bf16.msra.mxu0 %v658
  %668 = vmatpush.bf16.msra.mxu0 %v657
  %669 = vmatpush.bf16.msra.mxu0 %v656
  %670 = vmatpush.bf16.msra.mxu0 %v655
  %671 = vmatpush.bf16.msra.mxu0 %v654
  %672 = vmatpush.bf16.msra.mxu0 %v653
  %673 = vmatpush.bf16.msra.mxu0 %v652
  %674 = vmatpush.bf16.msra.mxu0 %v651
  %675 = vmatmul.bf16.gmra.mxu0 %v594
  %v676 = vpop.f32.mrf.mxu0
  %v677 = vadd.f32 %v618, %v676
  %v678 = vpop.f32.mrf.mxu0
  %v679 = vadd.f32 %v618, %v678
  %680 = vmatmul.bf16.gmra.mxu0 %v595
  %v681 = vpop.f32.mrf.mxu0
  %v682 = vadd.f32 %v618, %v681
  %v683 = vpop.f32.mrf.mxu0
  %v684 = vadd.f32 %v618, %v683
  %685 = vmatmul.bf16.gmra.mxu0 %v596
  %v686 = vpop.f32.mrf.mxu0
  %v687 = vadd.f32 %v618, %v686
  %v688 = vpop.f32.mrf.mxu0
  %v689 = vadd.f32 %v618, %v688
  %690 = vmatmul.bf16.gmra.mxu0 %v597
  %v691 = vpop.f32.mrf.mxu0
  %v692 = vadd.f32 %v618, %v691
  %v693 = vpop.f32.mrf.mxu0
  %v694 = vadd.f32 %v618, %v693
  %695 = vmatmul.bf16.gmra.mxu0 %v598
  %v696 = vpop.f32.mrf.mxu0
  %v697 = vadd.f32 %v618, %v696
  %v698 = vpop.f32.mrf.mxu0
  %v699 = vadd.f32 %v618, %v698
  %700 = vmatmul.bf16.gmra.mxu0 %v599
  %v701 = vpop.f32.mrf.mxu0
  %v702 = vadd.f32 %v618, %v701
  %v703 = vpop.f32.mrf.mxu0
  %v704 = vadd.f32 %v618, %v703
  %705 = vmatmul.bf16.gmra.mxu0 %v600
  %v706 = vpop.f32.mrf.mxu0
  %v707 = vadd.f32 %v618, %v706
  %v708 = vpop.f32.mrf.mxu0
  %v709 = vadd.f32 %v618, %v708
  %710 = vmatmul.bf16.gmra.mxu0 %v601
  %v711 = vpop.f32.mrf.mxu0
  %v712 = vadd.f32 %v618, %v711
  %v713 = vpop.f32.mrf.mxu0
  %v714 = vadd.f32 %v618, %v713
  %715 = vdwg.mxu0
  %716 = vst [vmem:[%s5] sm:$0xff] %v677
  %717 = vst [vmem:[%s5 + $0x8] sm:$0xff] %v679
  %718 = vst [vmem:[%s5 + $0x10] sm:$0xff] %v682
  %719 = vst [vmem:[%s5 + $0x18] sm:$0xff] %v684
  %720 = vst [vmem:[%s5 + $0x20] sm:$0xff] %v687
  %721 = vst [vmem:[%s5 + $0x28] sm:$0xff] %v689
  %722 = vst [vmem:[%s5 + $0x30] sm:$0xff] %v692
  %723 = vst [vmem:[%s5 + $0x38] sm:$0xff] %v694
  %724 = vst [vmem:[%s5 + $0x40] sm:$0xff] %v697
  %725 = vst [vmem:[%s5 + $0x48] sm:$0xff] %v699
  %726 = vst [vmem:[%s5 + $0x50] sm:$0xff] %v702
  %727 = vst [vmem:[%s5 + $0x58] sm:$0xff] %v704
  %728 = vst [vmem:[%s5 + $0x60] sm:$0xff] %v707
  %729 = vst [vmem:[%s5 + $0x68] sm:$0xff] %v709
  %730 = vst [vmem:[%s5 + $0x70] sm:$0xff] %v712
  %731 = vst [vmem:[%s5 + $0x78] sm:$0xff] %v714
  // Predicated region
  $region22: #{proposal_module_forward.1} parent=0 // pred_check
    _
  $region23: #{proposal_module_forward.1} parent=0 // pred_check_branch
    %733 = sbr.rel (0) target = $region25
  $region24: #{proposal_module_forward.1} parent=0 // pred_region
    _
  $region25: #{proposal_module_forward.1} parent=0 // pred_fallthru
    _
  // Predicated region
  $region26: #{proposal_module_forward.1} parent=0 // pred_check
    _
  $region27: #{proposal_module_forward.1} parent=0 // pred_check_branch
    %735 = sbr.rel (0) target = $region29
  $region28: #{proposal_module_forward.1} parent=0 // pred_region
    _
  $region29: #{proposal_module_forward.1} parent=0 // pred_fallthru
    _

</llo_original>
